<compile_context>
chip_gen: v7x
topology: tpu7x:2x2x1
jax: 0.10.0
libtpu: 0.0.40
codegen_flags: <defaults>
</compile_context>

<pallas_src>
import math

import jax
import jax.numpy as jnp
from jax.experimental import pallas as pl
from jax.experimental.pallas import tpu as pltpu

VMEM_SPEC = pl.BlockSpec(memory_space=pltpu.MemorySpace.VMEM)
SMEM_SPEC = pl.BlockSpec(memory_space=pltpu.MemorySpace.SMEM)


# ------------------------------ Fused kernel -------------------------------- #

def _fused_kernel(x_ref, perm_ref, score_ref, h0_ref, wst_ref, bsum_ref,
                  whn_ref, bhn_ref, a_ref, wl_ref, bl_ref, out_ref):
    n = x_ref.shape[0]
    f = h0_ref.shape[0]

    x = x_ref[...]                                                 # (N, F)
    h0 = h0_ref[...]                                               # (F, F) = GRU hidden

    # (1) Largest matmul first, independent of the evolved weight W: the MXU chews on
    #     A@X (N*N*F) while the VPU/EUP run the GRU gate nonlinearities below.
    ax = jnp.dot(a_ref[...], x, preferred_element_type=jnp.float32)        # (N, F)

    # (2) Top-k gather + score scaling as ONE score-scaled one-hot matmul:
    #     x_tilde[i] = x[perm[i]] * score_sel[i]   (score_sel computed in wrapper).
    sel = (perm_ref[...] ==
           jax.lax.broadcasted_iota(jnp.int32, (f, n), 1)).astype(jnp.float32)
    sel = sel * score_ref[...]                                             # (F, N)
    x_tilde = jnp.dot(sel, x, preferred_element_type=jnp.float32)          # (F, F)

    # (3) One GRU step (PyTorch gate order r, z, n), merged matmul with K = 2F:
    #     s = [x_tilde | h0] @ [Wih^T ; Whh^T] + (b_ih + b_hh)
    #     n = tanh(s_n + (r - 1) * gh_n)   with gh_n = h0 @ Whh_n^T + b_hh_n.
    xh = jnp.concatenate([x_tilde, h0], axis=1)                            # (F, 2F)
    s = jnp.dot(xh, wst_ref[...], preferred_element_type=jnp.float32) + bsum_ref[...]
    gh_n = jnp.dot(h0, whn_ref[...], preferred_element_type=jnp.float32) + bhn_ref[...]
    # NOTE: gate slices below are 32-lane offsets inside one 128-lane tile; fine at
    # F=32, pad/realign gate blocks to 128-lane boundaries if F is ever scaled up.
    r = jax.nn.sigmoid(s[:, 0:f])
    z = jax.nn.sigmoid(s[:, f:2 * f])
    ng = jnp.tanh(s[:, 2 * f:3 * f] + (r - 1.0) * gh_n)
    w = (1.0 - z) * ng + z * h0                                    # evolved weight (F, F)

    # (4) (A@X) @ W, relu, final matvec on the VPU; output stays (N, 1).
    h = jnp.maximum(jnp.dot(ax, w, preferred_element_type=jnp.float32), 0.0)   # (N, F)
    y = jnp.sum(h * wl_ref[...], axis=-1, keepdims=True)                       # (N, 1)
    out_ref[...] = y + bl_ref[0, 0]


def fused_after_topk(x, perm, score_sel, h0, w_stack, b_sum, whh_n, bhh_n, a, wl, bl):
    n, f = x.shape
    flops = int(2 * (n * n * f                 # A @ X
                     + f * n * f               # one-hot gather matmul
                     + f * (2 * f) * (3 * f)   # merged GRU gates
                     + f * f * f               # gh_n
                     + n * f * f))             # (A@X) @ W
    transcendentals = int(3 * f * f)
    bytes_accessed = int(4 * (x.size + perm.size + score_sel.size + h0.size
                              + w_stack.size + b_sum.size + whh_n.size + bhh_n.size
                              + a.size + wl.size + bl.size + n))
    return pl.pallas_call(
        _fused_kernel,
        out_shape=jax.ShapeDtypeStruct((n, 1), jnp.float32),
        in_specs=[VMEM_SPEC] * 10 + [SMEM_SPEC],
        out_specs=VMEM_SPEC,
        cost_estimate=pl.CostEstimate(flops=flops,
                                      transcendentals=transcendentals,
                                      bytes_accessed=bytes_accessed),
    )(x, perm, score_sel, h0, w_stack, b_sum, whh_n, bhh_n, a, wl, bl)


# ------------------------------- JAX glue ----------------------------------- #

def dense_gcn_norm(edge_index, num_nodes):
    # gcn_norm with add_remaining_self_loops semantics (only nodes WITHOUT an existing
    # self-loop get one added), symmetric normalization, materialized densely.
    src, dst = edge_index[0], edge_index[1]
    w = jnp.ones(src.shape[0], jnp.float32)
    a = jnp.zeros((num_nodes, num_nodes), jnp.float32).at[dst, src].add(w)
    diag = jnp.diagonal(a)
    a = a + jnp.diag(jnp.where(diag > 0.0, 0.0, 1.0))
    deg = jnp.sum(a, axis=1)
    dinv = jnp.where(deg > 0, jax.lax.rsqrt(deg), 0.0)
    return a * dinv[:, None] * dinv[None, :]


def init_params(key, channels):
    f = channels
    stdv = 1.0 / math.sqrt(f)
    ks = jax.random.split(key, 8)
    u = lambda k, shape: jax.random.uniform(k, shape, jnp.float32, -stdv, stdv)
    return dict(
        pool_p=u(ks[0], (1, f)),            # TopKPooling weight
        init_w=u(ks[1], (1, f, f)),         # EvolveGCNH.initial_weight
        gru_w_ih=u(ks[2], (3 * f, f)),      # GRU weight_ih_l0 (r,z,n)
        gru_w_hh=u(ks[3], (3 * f, f)),      # GRU weight_hh_l0
        gru_b_ih=u(ks[4], (3 * f,)),
        gru_b_hh=u(ks[5], (3 * f,)),
        lin_w=u(ks[6], (1, f)),             # final Linear(F, 1)
        lin_b=u(ks[7], (1,)),
    )


def prepare_params(params):
    # Parameter-only preprocessing, done ONCE (not per forward): transposed / stacked
    # GRU weights, pre-summed biases, pool-weight norm, reshaped biases.
    f = params["pool_p"].shape[-1]
    p = params["pool_p"]
    return dict(
        pool_p_row=p[0],                                            # (F,)
        inv_p_norm=jax.lax.rsqrt(jnp.sum(p * p)),                   # 1 / ||p||
        h0=params["init_w"][0],                                     # (F, F)
        w_stack=jnp.concatenate([params["gru_w_ih"].T,
                                 params["gru_w_hh"].T], axis=0),    # (2F, 3F)
        b_sum=(params["gru_b_ih"] + params["gru_b_hh"]).reshape(1, 3 * f),
        whh_n=params["gru_w_hh"][2 * f:3 * f, :].T,                 # (F, F)
        bhh_n=params["gru_b_hh"][2 * f:3 * f].reshape(1, f),        # (1, F)
        lin_w=params["lin_w"],                                      # (1, F)
        lin_b=params["lin_b"].reshape(1, 1),                        # (1, 1) -> SMEM
    )


def evolve_gcn_h_forward(prep, x, edge_index):
    n, f = x.shape
    # TopKPooling: ratio = in_channels / num_of_nodes, k = ceil(ratio * N).
    k = int(math.ceil((float(f) / float(n)) * n))
    assert k == f, "selected node count (GRU batch) must equal F"
    # Data-dependent top-k stays in XLA. tanh(./||p||) is strictly increasing, so
    # ranking the raw projection gives the same perm as ranking the tanh scores, and
    # the k selected scores are recovered directly from the top_k VALUES (no per-node
    # tanh / no in-kernel score recompute).
    proj = x @ prep["pool_p_row"]                                   # (N,)
    top_vals, perm = jax.lax.top_k(proj, k)
    score_sel = jnp.tanh(top_vals * prep["inv_p_norm"]).reshape(k, 1)
    perm = perm.astype(jnp.int32).reshape(k, 1)

    a = dense_gcn_norm(edge_index, n)

    return fused_after_topk(x, perm, score_sel, prep["h0"], prep["w_stack"],
                            prep["b_sum"], prep["whh_n"], prep["bhh_n"], a,
                            prep["lin_w"], prep["lin_b"])           # (N, 1)


if __name__ == "__main__":
    key = jax.random.PRNGKey(0)
    num_nodes, out_channels, num_edges = 64, 32, 128
    kx, ke, kp = jax.random.split(key, 3)

    x = jax.random.normal(kx, (num_nodes, out_channels), jnp.float32)
    edge_index = jax.random.randint(ke, (2, num_edges), 0, num_nodes, dtype=jnp.int32)
    params = init_params(kp, out_channels)
    prep = prepare_params(params)        # hoisted param-only preprocessing

    out = evolve_gcn_h_forward(prep, x, edge_index)
    out = jax.block_until_ready(out)
    assert out.shape == (num_nodes, 1) and out.dtype == jnp.float32
    print("KERNEL_OK")
</pallas_src>

<mosaic_0001>
module attributes {stable_mosaic.version = 11 : i64} {
  func.func @_fused_kernel(%arg0: memref<64x32xf32, #tpu.memory_space<vmem>>, %arg1: memref<32x1xi32, #tpu.memory_space<vmem>>, %arg2: memref<32x1xf32, #tpu.memory_space<vmem>>, %arg3: memref<32x32xf32, #tpu.memory_space<vmem>>, %arg4: memref<64x96xf32, #tpu.memory_space<vmem>>, %arg5: memref<1x96xf32, #tpu.memory_space<vmem>>, %arg6: memref<32x32xf32, #tpu.memory_space<vmem>>, %arg7: memref<1x32xf32, #tpu.memory_space<vmem>>, %arg8: memref<64x64xf32, #tpu.memory_space<vmem>>, %arg9: memref<1x32xf32, #tpu.memory_space<vmem>>, %arg10: memref<1x1xf32, #tpu.memory_space<smem>>, %arg11: memref<64x1xf32, #tpu.memory_space<vmem>>) attributes {dimension_semantics = [], scalar_prefetch = 0 : i64, scratch_operands = 0 : i64, tpu.core_type = #tpu.core_type<tc>} {
    %c0 = arith.constant 0 : index
    %c0_0 = arith.constant 0 : index
    %0 = vector.load %arg0[%c0, %c0_0] : memref<64x32xf32, #tpu.memory_space<vmem>>, vector<64x32xf32>
    %c0_1 = arith.constant 0 : index
    %c0_2 = arith.constant 0 : index
    %1 = vector.load %arg3[%c0_1, %c0_2] : memref<32x32xf32, #tpu.memory_space<vmem>>, vector<32x32xf32>
    %c0_3 = arith.constant 0 : index
    %c0_4 = arith.constant 0 : index
    %2 = vector.load %arg8[%c0_3, %c0_4] : memref<64x64xf32, #tpu.memory_space<vmem>>, vector<64x64xf32>
    %cst = arith.constant dense<0.000000e+00> : vector<64x32xf32>
    %3 = tpu.matmul %2, %0, %cst {dimension_numbers = #tpu.dot_dimension_numbers<[1], [0], [0], [1], [0, 0, 1, 1], [], []>} : vector<64x64xf32>, vector<64x32xf32>, vector<64x32xf32> -> vector<64x32xf32>
    %c0_5 = arith.constant 0 : index
    %c0_6 = arith.constant 0 : index
    %4 = vector.load %arg1[%c0_5, %c0_6] : memref<32x1xi32, #tpu.memory_space<vmem>>, vector<32x1xi32>
    %5 = tpu.iota {dimensions = array<i32: 1>} : vector<32x64xi32>
    %6 = vector.broadcast %4 : vector<32x1xi32> to vector<32x64xi32>
    %7 = arith.cmpi eq, %6, %5 : vector<32x64xi32>
    %8 = arith.extui %7 : vector<32x64xi1> to vector<32x64xi32>
    %9 = arith.sitofp %8 : vector<32x64xi32> to vector<32x64xf32>
    %c0_7 = arith.constant 0 : index
    %c0_8 = arith.constant 0 : index
    %10 = vector.load %arg2[%c0_7, %c0_8] : memref<32x1xf32, #tpu.memory_space<vmem>>, vector<32x1xf32>
    %11 = vector.broadcast %10 : vector<32x1xf32> to vector<32x64xf32>
    %12 = arith.mulf %9, %11 : vector<32x64xf32>
    %cst_9 = arith.constant dense<0.000000e+00> : vector<32x32xf32>
    %13 = tpu.matmul %12, %0, %cst_9 {dimension_numbers = #tpu.dot_dimension_numbers<[1], [0], [0], [1], [0, 0, 1, 1], [], []>} : vector<32x64xf32>, vector<64x32xf32>, vector<32x32xf32> -> vector<32x32xf32>
    %14 = tpu.concatenate %13, %1 in 1 : vector<32x32xf32>, vector<32x32xf32> -> vector<32x64xf32>
    %c0_10 = arith.constant 0 : index
    %c0_11 = arith.constant 0 : index
    %15 = vector.load %arg4[%c0_10, %c0_11] : memref<64x96xf32, #tpu.memory_space<vmem>>, vector<64x96xf32>
    %cst_12 = arith.constant dense<0.000000e+00> : vector<32x96xf32>
    %16 = tpu.matmul %14, %15, %cst_12 {dimension_numbers = #tpu.dot_dimension_numbers<[1], [0], [0], [1], [0, 0, 1, 1], [], []>} : vector<32x64xf32>, vector<64x96xf32>, vector<32x96xf32> -> vector<32x96xf32>
    %c0_13 = arith.constant 0 : index
    %c0_14 = arith.constant 0 : index
    %17 = vector.load %arg5[%c0_13, %c0_14] : memref<1x96xf32, #tpu.memory_space<vmem>>, vector<1x96xf32>
    %18 = vector.broadcast %17 : vector<1x96xf32> to vector<32x96xf32>
    %19 = arith.addf %16, %18 : vector<32x96xf32>
    %c0_15 = arith.constant 0 : index
    %c0_16 = arith.constant 0 : index
    %20 = vector.load %arg6[%c0_15, %c0_16] : memref<32x32xf32, #tpu.memory_space<vmem>>, vector<32x32xf32>
    %cst_17 = arith.constant dense<0.000000e+00> : vector<32x32xf32>
    %21 = tpu.matmul %1, %20, %cst_17 {dimension_numbers = #tpu.dot_dimension_numbers<[1], [0], [0], [1], [0, 0, 1, 1], [], []>} : vector<32x32xf32>, vector<32x32xf32>, vector<32x32xf32> -> vector<32x32xf32>
    %c0_18 = arith.constant 0 : index
    %c0_19 = arith.constant 0 : index
    %22 = vector.load %arg7[%c0_18, %c0_19] : memref<1x32xf32, #tpu.memory_space<vmem>>, vector<1x32xf32>
    %23 = vector.broadcast %22 : vector<1x32xf32> to vector<32x32xf32>
    %24 = arith.addf %21, %23 : vector<32x32xf32>
    %25 = vector.extract_strided_slice %19 {offsets = [0, 0], sizes = [32, 32], strides = [1, 1]} : vector<32x96xf32> to vector<32x32xf32>
    %26 = arith.negf %25 : vector<32x32xf32>
    %27 = math.exp %26 : vector<32x32xf32>
    %cst_20 = arith.constant 1.000000e+00 : f32
    %28 = vector.broadcast %cst_20 : f32 to vector<32x32xf32>
    %29 = arith.addf %28, %27 : vector<32x32xf32>
    %30 = arith.divf %28, %29 : vector<32x32xf32>
    %31 = vector.extract_strided_slice %19 {offsets = [0, 32], sizes = [32, 32], strides = [1, 1]} : vector<32x96xf32> to vector<32x32xf32>
    %32 = arith.negf %31 : vector<32x32xf32>
    %33 = math.exp %32 : vector<32x32xf32>
    %cst_21 = arith.constant 1.000000e+00 : f32
    %34 = vector.broadcast %cst_21 : f32 to vector<32x32xf32>
    %35 = arith.addf %34, %33 : vector<32x32xf32>
    %36 = arith.divf %34, %35 : vector<32x32xf32>
    %37 = vector.extract_strided_slice %19 {offsets = [0, 64], sizes = [32, 32], strides = [1, 1]} : vector<32x96xf32> to vector<32x32xf32>
    %cst_22 = arith.constant 1.000000e+00 : f32
    %38 = vector.broadcast %cst_22 : f32 to vector<32x32xf32>
    %39 = arith.subf %30, %38 : vector<32x32xf32>
    %40 = arith.mulf %39, %24 : vector<32x32xf32>
    %41 = arith.addf %37, %40 : vector<32x32xf32>
    %42 = math.tanh %41 : vector<32x32xf32>
    %cst_23 = arith.constant 1.000000e+00 : f32
    %43 = vector.broadcast %cst_23 : f32 to vector<32x32xf32>
    %44 = arith.subf %43, %36 : vector<32x32xf32>
    %45 = arith.mulf %44, %42 : vector<32x32xf32>
    %46 = arith.mulf %36, %1 : vector<32x32xf32>
    %47 = arith.addf %45, %46 : vector<32x32xf32>
    %cst_24 = arith.constant dense<0.000000e+00> : vector<64x32xf32>
    %48 = tpu.matmul %3, %47, %cst_24 {dimension_numbers = #tpu.dot_dimension_numbers<[1], [0], [0], [1], [0, 0, 1, 1], [], []>} : vector<64x32xf32>, vector<32x32xf32>, vector<64x32xf32> -> vector<64x32xf32>
    %cst_25 = arith.constant 0.000000e+00 : f32
    %49 = vector.broadcast %cst_25 : f32 to vector<64x32xf32>
    %50 = arith.maximumf %48, %49 : vector<64x32xf32>
    %c0_26 = arith.constant 0 : index
    %c0_27 = arith.constant 0 : index
    %51 = vector.load %arg9[%c0_26, %c0_27] : memref<1x32xf32, #tpu.memory_space<vmem>>, vector<1x32xf32>
    %52 = vector.broadcast %51 : vector<1x32xf32> to vector<64x32xf32>
    %53 = arith.mulf %50, %52 : vector<64x32xf32>
    %cst_28 = arith.constant dense<0.000000e+00> : vector<64xf32>
    %54 = vector.multi_reduction <add>, %53, %cst_28 [1] : vector<64x32xf32> to vector<64xf32>
    %55 = vector.shape_cast %54 : vector<64xf32> to vector<64x1xf32>
    %c0_29 = arith.constant 0 : index
    %c0_30 = arith.constant 0 : index
    %56 = memref.load %arg10[%c0_29, %c0_30] : memref<1x1xf32, #tpu.memory_space<smem>>
    %57 = vector.broadcast %56 : f32 to vector<64x1xf32>
    %58 = arith.addf %55, %57 : vector<64x1xf32>
    %c0_31 = arith.constant 0 : index
    %c0_32 = arith.constant 0 : index
    %59 = vector.load %arg11[%c0_31, %c0_32] : memref<64x1xf32, #tpu.memory_space<vmem>>, vector<64x1xf32>
    tpu.vector_store %arg11[%c0_31, %c0_32], %58 {strides = array<i32>} : memref<64x1xf32, #tpu.memory_space<vmem>>, vector<64x1xf32>,
    return
  }
}

</mosaic_0001>

<llo_original>
// kernel: tpu_custom_call.1
$region0: #{tpu_custom_call.1}
  #allocation0 [shape = 'u32[]', space=smem, size = 0x4, offset = 0x4, fixed_abs, tag = 'smem constant byte address 0x4 - core index']
  #allocation1 [shape = 'u32[144,128]{1,0:T(1,128)}', space=vmem, size = 0x12000, scoped, tag = 'internal scratch']
  #allocation2 [shape = 'f32[1,1]{1,0:T(1,128)S(6)}', space=smem, size = 0x200, scoped, tag = 'scoped memory for tpu_custom_call.1']
  %s0 = inlined_call_operand.vmem [shape: f32[64,32], index: 0, kind: input, shape index: {}]
  %s1 = inlined_call_operand.vmem [shape: s32[32,1], index: 1, kind: input, shape index: {}]
  %s2 = inlined_call_operand.vmem [shape: f32[32,1], index: 2, kind: input, shape index: {}]
  %s3 = inlined_call_operand.hbm [shape: f32[32,32], index: 3, kind: input, shape index: {}]
  %s4 = inlined_call_operand.vmem [shape: f32[64,96], index: 4, kind: input, shape index: {}]
  %s5 = inlined_call_operand.vmem [shape: f32[1,96], index: 5, kind: input, shape index: {}]
  %s6 = inlined_call_operand.hbm [shape: f32[32,32], index: 6, kind: input, shape index: {}]
  %s7 = inlined_call_operand.vmem [shape: f32[1,32], index: 7, kind: input, shape index: {}]
  %s8 = inlined_call_operand.vmem [shape: f32[64,64], index: 8, kind: input, shape index: {}]
  %s9 = inlined_call_operand.vmem [shape: f32[1,32], index: 9, kind: input, shape index: {}]
  %s10 = inlined_call_operand.<no memory space> [shape: f32[1,1], index: 10, kind: input, shape index: {}]
  %s11 = inlined_call_operand.vmem [shape: f32[64,1], index: 11, kind: output, shape index: {}]
  %s12 = sld [smem:[#allocation0]]
  $region62: #{tpu_custom_call.1} parent=0
    _
  %s14 = ssub.s32 1, %s12
  %s15 = scalar_select 0, %s14, %s12
  %16 = sst [smem:[#allocation2]] %s10
  $region1: #{tpu_custom_call.1} parent=0
    #allocation3 [shape = 'u8[16384]{0}', space=vmem, size = 0x4000, scoped, tag = 'input window, operand 3, single buffered']
    #allocation4 [shape = 's32[1]{0}', space=sflag, size = 0x4, scoped, tag = 'scoped memory for tpu_custom_call.1']
    #allocation5 [shape = 'u8[16384]{0}', space=vmem, size = 0x4000, scoped, tag = 'input window, operand 6, single buffered']
    #allocation6 [shape = 's32[1]{0}', space=sflag, size = 0x4, scoped, tag = 'scoped memory for tpu_custom_call.1']
    %17 = vsyncpa [#allocation4], 0
    %18 = vsyncpa [#allocation6], 0
    // Predicated region
    $region2: #{tpu_custom_call.1} parent=1 // pred_check
      _
    $region3: #{tpu_custom_call.1} parent=1 // pred_check_branch
      %20 = sbr.rel (0) target = $region5
    $region4: #{tpu_custom_call.1} parent=1 // pred_region
      _
    $region5: #{tpu_custom_call.1} parent=1 // pred_fallthru
      _
    // Predicated region
    $region6: #{tpu_custom_call.1} parent=1 // pred_check
      _
    $region7: #{tpu_custom_call.1} parent=1 // pred_check_branch
      %22 = sbr.rel (0) target = $region9
    $region8: #{tpu_custom_call.1} parent=1 // pred_region
      _
    $region9: #{tpu_custom_call.1} parent=1 // pred_fallthru
      _
    // Predicated region
    $region10: #{tpu_custom_call.1} parent=1 // pred_check
      _
    $region11: #{tpu_custom_call.1} parent=1 // pred_check_branch
      %24 = sbr.rel (0) target = $region13
    $region12: #{tpu_custom_call.1} parent=1 // pred_region
      _
    $region13: #{tpu_custom_call.1} parent=1 // pred_fallthru
      _
    // Predicated region
    $region14: #{tpu_custom_call.1} parent=1 // pred_check
      _
    $region15: #{tpu_custom_call.1} parent=1 // pred_check_branch
      %26 = sbr.rel (0) target = $region17
    $region16: #{tpu_custom_call.1} parent=1 // pred_region
      %s28 = ssub.s32 512, 512
      %29 = vsyncadd [#allocation4], %s28
      %s30 = sshll.u32 [#allocation3], 4
      %s31 = int_to_ptr.vmem [resolvable:$true] %s30
      %36 = dma.hbm_to_vmem [thread:$0]  %s3, 512, %s31, [#allocation4], 128, 128, 8
    $region17: #{tpu_custom_call.1} parent=1 // pred_fallthru
      _
    // Predicated region
    $region18: #{tpu_custom_call.1} parent=1 // pred_check
      _
    $region19: #{tpu_custom_call.1} parent=1 // pred_check_branch
      %38 = sbr.rel (0) target = $region21
    $region20: #{tpu_custom_call.1} parent=1 // pred_region
      _
    $region21: #{tpu_custom_call.1} parent=1 // pred_fallthru
      _
    // Predicated region
    $region22: #{tpu_custom_call.1} parent=1 // pred_check
      _
    $region23: #{tpu_custom_call.1} parent=1 // pred_check_branch
      %40 = sbr.rel (0) target = $region25
    $region24: #{tpu_custom_call.1} parent=1 // pred_region
      _
    $region25: #{tpu_custom_call.1} parent=1 // pred_fallthru
      _
    // Predicated region
    $region26: #{tpu_custom_call.1} parent=1 // pred_check
      _
    $region27: #{tpu_custom_call.1} parent=1 // pred_check_branch
      %42 = sbr.rel (0) target = $region29
    $region28: #{tpu_custom_call.1} parent=1 // pred_region
      %s44 = ssub.s32 512, 512
      %45 = vsyncadd [#allocation6], %s44
      %s46 = sshll.u32 [#allocation5], 4
      %s47 = int_to_ptr.vmem [resolvable:$true] %s46
      %52 = dma.hbm_to_vmem [thread:$0]  %s6, 512, %s47, [#allocation6], 128, 128, 8
    $region29: #{tpu_custom_call.1} parent=1 // pred_fallthru
      _
    // Predicated region
    $region30: #{tpu_custom_call.1} parent=1 // pred_check
      _
    $region31: #{tpu_custom_call.1} parent=1 // pred_check_branch
      %54 = sbr.rel (0) target = $region33
    $region32: #{tpu_custom_call.1} parent=1 // pred_region
      _
    $region33: #{tpu_custom_call.1} parent=1 // pred_fallthru
      _
    // Predicated region
    $region34: #{tpu_custom_call.1} parent=1 // pred_check
      _
    $region35: #{tpu_custom_call.1} parent=1 // pred_check_branch
      %56 = sbr.rel (0) target = $region37
    $region36: #{tpu_custom_call.1} parent=1 // pred_region
      _
    $region37: #{tpu_custom_call.1} parent=1 // pred_fallthru
      _
    // Predicated region
    $region38: #{tpu_custom_call.1} parent=1 // pred_check
      _
    $region39: #{tpu_custom_call.1} parent=1 // pred_check_branch
      %58 = sbr.rel (0) target = $region41
    $region40: #{tpu_custom_call.1} parent=1 // pred_region
      _
    $region41: #{tpu_custom_call.1} parent=1 // pred_fallthru
      _
    // Predicated region
    $region42: #{tpu_custom_call.1} parent=1 // pred_check
      _
    $region43: #{tpu_custom_call.1} parent=1 // pred_check_branch
      %60 = sbr.rel (0) target = $region45
    $region44: #{tpu_custom_call.1} parent=1 // pred_region
      _
    $region45: #{tpu_custom_call.1} parent=1 // pred_fallthru
      _
    // Predicated region
    $region46: #{tpu_custom_call.1} parent=1 // pred_check
      _
    $region47: #{tpu_custom_call.1} parent=1 // pred_check_branch
      %62 = sbr.rel (0) target = $region49
    $region48: #{tpu_custom_call.1} parent=1 // pred_region
      %63 = dma.done [#allocation4], 512
    $region49: #{tpu_custom_call.1} parent=1 // pred_fallthru
      _
    // Predicated region
    $region50: #{tpu_custom_call.1} parent=1 // pred_check
      _
    $region51: #{tpu_custom_call.1} parent=1 // pred_check_branch
      %65 = sbr.rel (0) target = $region53
    $region52: #{tpu_custom_call.1} parent=1 // pred_region
      %66 = dma.done [#allocation6], 512
    $region53: #{tpu_custom_call.1} parent=1 // pred_fallthru
      _
    %v67 = vld [vmem:[%s0] sm:$0xff]
    %v68 = vld [vmem:[%s0 + $0x8] sm:$0xff]
    %v69 = vld [vmem:[%s0 + $0x10] sm:$0xff]
    %v70 = vld [vmem:[%s0 + $0x18] sm:$0xff]
    %v71 = vld [vmem:[%s0 + $0x20] sm:$0xff]
    %v72 = vld [vmem:[%s0 + $0x28] sm:$0xff]
    %v73 = vld [vmem:[%s0 + $0x30] sm:$0xff]
    %v74 = vld [vmem:[%s0 + $0x38] sm:$0xff]
    %v75 = vld [vmem:[#allocation3] sm:$0xff]
    %v76 = vld [vmem:[#allocation3 + $0x8] sm:$0xff]
    %v77 = vld [vmem:[#allocation3 + $0x10] sm:$0xff]
    %v78 = vld [vmem:[#allocation3 + $0x18] sm:$0xff]
    %v79 = vld [vmem:[%s8] sm:$0xff]
    %v80 = vld [vmem:[%s8 + $0x8] sm:$0xff]
    %v81 = vld [vmem:[%s8 + $0x10] sm:$0xff]
    %v82 = vld [vmem:[%s8 + $0x18] sm:$0xff]
    %v83 = vld [vmem:[%s8 + $0x20] sm:$0xff]
    %v84 = vld [vmem:[%s8 + $0x28] sm:$0xff]
    %v85 = vld [vmem:[%s8 + $0x30] sm:$0xff]
    %v86 = vld [vmem:[%s8 + $0x38] sm:$0xff]
    %vm87 = vcmask 523264
    %v89 = vsel %vm87, %v79, 0
    %v92 = vsel %vm87, %v80, 0
    %v95 = vsel %vm87, %v81, 0
    %v98 = vsel %vm87, %v82, 0
    %v101 = vsel %vm87, %v83, 0
    %v104 = vsel %vm87, %v84, 0
    %v107 = vsel %vm87, %v85, 0
    %v110 = vsel %vm87, %v86, 0
    %112 = vmatprep.subr.mxu0 0.0
    %113 = vmatpush1.msra.mxu0 %v67
    %114 = vmatprep.subr.mxu0 0.0
    %115 = vmatpush1.msra.mxu0 %v68
    %116 = vmatprep.subr.mxu0 0.0
    %117 = vmatpush1.msra.mxu0 %v69
    %118 = vmatprep.subr.mxu0 0.0
    %119 = vmatpush1.msra.mxu0 %v70
    %120 = vmatprep.subr.mxu0 0.0
    %121 = vmatpush1.msra.mxu0 %v71
    %122 = vmatprep.subr.mxu0 0.0
    %123 = vmatpush1.msra.mxu0 %v72
    %124 = vmatprep.subr.mxu0 0.0
    %125 = vmatpush1.msra.mxu0 %v73
    %126 = vmatprep.subr.mxu0 0.0
    %127 = vmatpush1.msra.mxu0 %v74
    %128 = vmatprep.subr.mxu0 0.0
    %129 = vmatpush1.msra.mxu0 0.0
    %130 = vmatprep.subr.mxu0 0.0
    %131 = vmatpush1.msra.mxu0 0.0
    %132 = vmatprep.subr.mxu0 0.0
    %133 = vmatpush1.msra.mxu0 0.0
    %134 = vmatprep.subr.mxu0 0.0
    %135 = vmatpush1.msra.mxu0 0.0
    %136 = vmatprep.subr.mxu0 0.0
    %137 = vmatpush1.msra.mxu0 0.0
    %138 = vmatprep.subr.mxu0 0.0
    %139 = vmatpush1.msra.mxu0 0.0
    %140 = vmatprep.subr.mxu0 0.0
    %141 = vmatpush1.msra.mxu0 0.0
    %142 = vmatprep.subr.mxu0 0.0
    %143 = vmatpush1.msra.mxu0 0.0
    %144 = vmatprep.subr.mxu0 0.0
    %145 = vmatpush1.msra.mxu0 0.0
    %146 = vmatprep.subr.mxu0 0.0
    %147 = vmatpush1.msra.mxu0 0.0
    %148 = vmatprep.subr.mxu0 0.0
    %149 = vmatpush1.msra.mxu0 0.0
    %150 = vmatprep.subr.mxu0 0.0
    %151 = vmatpush1.msra.mxu0 0.0
    %152 = vmatprep.subr.mxu0 0.0
    %153 = vmatpush1.msra.mxu0 0.0
    %154 = vmatprep.subr.mxu0 0.0
    %155 = vmatpush1.msra.mxu0 0.0
    %156 = vmatprep.subr.mxu0 0.0
    %157 = vmatpush1.msra.mxu0 0.0
    %158 = vmatprep.subr.mxu0 0.0
    %159 = vmatpush1.msra.mxu0 0.0
    %160 = vmatprep.subr.mxu0 0.0
    %161 = vmatpush1.msra.mxu0 0.0
    %162 = vmatprep.subr.mxu0 0.0
    %163 = vmatpush1.msra.mxu0 0.0
    %164 = vmatprep.subr.mxu0 0.0
    %165 = vmatpush1.msra.mxu0 0.0
    %166 = vmatprep.subr.mxu0 0.0
    %167 = vmatpush1.msra.mxu0 0.0
    %168 = vmatprep.subr.mxu0 0.0
    %169 = vmatpush1.msra.mxu0 0.0
    %170 = vmatprep.subr.mxu0 0.0
    %171 = vmatpush1.msra.mxu0 0.0
    %172 = vmatprep.subr.mxu0 0.0
    %173 = vmatpush1.msra.mxu0 0.0
    %174 = vmatprep.subr.mxu0 0.0
    %175 = vmatpush1.msra.mxu0 0.0
    %176 = vmatprep.mubr.f32.mxu0 0.0
    %177 = vmatmul.mubr.f32.gmra.mrb[0].mxu0 %v89
    %v178 = vpop.f32.mrb[0].mxu0
    %v179 = vadd.f32 0.0, %v178
    %v180 = vpop.f32.mrb[0].mxu0
    %181 = vmatprep.mubr.f32.mxu0 0.0
    %182 = vmatmul.mubr.f32.gmra.mrb[0].mxu0 %v92
    %v183 = vpop.f32.mrb[0].mxu0
    %v184 = vadd.f32 0.0, %v183
    %v185 = vpop.f32.mrb[0].mxu0
    %186 = vmatprep.mubr.f32.mxu0 0.0
    %187 = vmatmul.mubr.f32.gmra.mrb[0].mxu0 %v95
    %v188 = vpop.f32.mrb[0].mxu0
    %v189 = vadd.f32 0.0, %v188
    %v190 = vpop.f32.mrb[0].mxu0
    %191 = vmatprep.mubr.f32.mxu0 0.0
    %192 = vmatmul.mubr.f32.gmra.mrb[0].mxu0 %v98
    %v193 = vpop.f32.mrb[0].mxu0
    %v194 = vadd.f32 0.0, %v193
    %v195 = vpop.f32.mrb[0].mxu0
    %196 = vmatprep.mubr.f32.mxu0 0.0
    %197 = vmatmul.mubr.f32.gmra.mrb[0].mxu0 %v101
    %v198 = vpop.f32.mrb[0].mxu0
    %v199 = vadd.f32 0.0, %v198
    %v200 = vpop.f32.mrb[0].mxu0
    %201 = vmatprep.mubr.f32.mxu0 0.0
    %202 = vmatmul.mubr.f32.gmra.mrb[0].mxu0 %v104
    %v203 = vpop.f32.mrb[0].mxu0
    %v204 = vadd.f32 0.0, %v203
    %v205 = vpop.f32.mrb[0].mxu0
    %206 = vmatprep.mubr.f32.mxu0 0.0
    %207 = vmatmul.mubr.f32.gmra.mrb[0].mxu0 %v107
    %v208 = vpop.f32.mrb[0].mxu0
    %v209 = vadd.f32 0.0, %v208
    %v210 = vpop.f32.mrb[0].mxu0
    %211 = vmatprep.mubr.f32.mxu0 0.0
    %212 = vmatmul.mubr.f32.gmra.mrb[0].mxu0 %v110
    %v213 = vpop.f32.mrb[0].mxu0
    %v214 = vadd.f32 0.0, %v213
    %v215 = vpop.f32.mrb[0].mxu0
    %216 = vdwg.mxu0
    %v217 = vld [vmem:[%s1] sm:$0xff]
    %v218 = vld [vmem:[%s1 + $0x8] sm:$0xff]
    %v219 = vld [vmem:[%s1 + $0x10] sm:$0xff]
    %v220 = vld [vmem:[%s1 + $0x18] sm:$0xff]
    %v221 = vlaneseq
    %v222 = vand.u32 %v221, 127
    %223 = vset.pattern.permute.xlu0 0
    %224 = vperm.xlu0 %223, %v217
    %v225 = vpop.permute.xlu0 %224
    %226 = vset.pattern.permute.xlu0 0
    %227 = vperm.xlu0 %226, %v218
    %v228 = vpop.permute.xlu0 %227
    %229 = vset.pattern.permute.xlu0 0
    %230 = vperm.xlu0 %229, %v219
    %v231 = vpop.permute.xlu0 %230
    %232 = vset.pattern.permute.xlu0 0
    %233 = vperm.xlu0 %232, %v220
    %v234 = vpop.permute.xlu0 %233
    %vm235 = vcmp.eq.s32.totalorder %v225, %v222
    %vm236 = vcmp.eq.s32.totalorder %v228, %v222
    %vm237 = vcmp.eq.s32.totalorder %v231, %v222
    %vm238 = vcmp.eq.s32.totalorder %v234, %v222
    %v239 = vsel %vm235, 1, 0
    %v240 = vsel %vm236, 1, 0
    %v241 = vsel %vm237, 1, 0
    %v242 = vsel %vm238, 1, 0
    %v243 = vcvt.s32.f32 %v239
    %v244 = vcvt.s32.f32 %v240
    %v245 = vcvt.s32.f32 %v241
    %v246 = vcvt.s32.f32 %v242
    %v247 = vld [vmem:[%s2] sm:$0xff]
    %v248 = vld [vmem:[%s2 + $0x8] sm:$0xff]
    %v249 = vld [vmem:[%s2 + $0x10] sm:$0xff]
    %v250 = vld [vmem:[%s2 + $0x18] sm:$0xff]
    %252 = vset.pattern.permute.xlu0 0
    %253 = vperm.xlu0 %252, %v247
    %v254 = vpop.permute.xlu0 %253
    %257 = vset.pattern.permute.xlu0 0
    %258 = vperm.xlu0 %257, %v248
    %v259 = vpop.permute.xlu0 %258
    %262 = vset.pattern.permute.xlu0 0
    %263 = vperm.xlu0 %262, %v249
    %v264 = vpop.permute.xlu0 %263
    %267 = vset.pattern.permute.xlu0 0
    %268 = vperm.xlu0 %267, %v250
    %v269 = vpop.permute.xlu0 %268
    %v271 = vmul.f32 %v243, %v254
    %v272 = vmul.f32 %v244, %v259
    %v273 = vmul.f32 %v245, %v264
    %v274 = vmul.f32 %v246, %v269
    %v276 = vsel %vm87, %v271, 0
    %v279 = vsel %vm87, %v272, 0
    %v282 = vsel %vm87, %v273, 0
    %v285 = vsel %vm87, %v274, 0
    %287 = vmatprep.subr.mxu0 0.0
    %288 = vmatpush1.msra.mxu0 %v67
    %289 = vmatprep.subr.mxu0 0.0
    %290 = vmatpush1.msra.mxu0 %v68
    %291 = vmatprep.subr.mxu0 0.0
    %292 = vmatpush1.msra.mxu0 %v69
    %293 = vmatprep.subr.mxu0 0.0
    %294 = vmatpush1.msra.mxu0 %v70
    %295 = vmatprep.subr.mxu0 0.0
    %296 = vmatpush1.msra.mxu0 %v71
    %297 = vmatprep.subr.mxu0 0.0
    %298 = vmatpush1.msra.mxu0 %v72
    %299 = vmatprep.subr.mxu0 0.0
    %300 = vmatpush1.msra.mxu0 %v73
    %301 = vmatprep.subr.mxu0 0.0
    %302 = vmatpush1.msra.mxu0 %v74
    %303 = vmatprep.subr.mxu0 0.0
    %304 = vmatpush1.msra.mxu0 0.0
    %305 = vmatprep.subr.mxu0 0.0
    %306 = vmatpush1.msra.mxu0 0.0
    %307 = vmatprep.subr.mxu0 0.0
    %308 = vmatpush1.msra.mxu0 0.0
    %309 = vmatprep.subr.mxu0 0.0
    %310 = vmatpush1.msra.mxu0 0.0
    %311 = vmatprep.subr.mxu0 0.0
    %312 = vmatpush1.msra.mxu0 0.0
    %313 = vmatprep.subr.mxu0 0.0
    %314 = vmatpush1.msra.mxu0 0.0
    %315 = vmatprep.subr.mxu0 0.0
    %316 = vmatpush1.msra.mxu0 0.0
    %317 = vmatprep.subr.mxu0 0.0
    %318 = vmatpush1.msra.mxu0 0.0
    %319 = vmatprep.subr.mxu0 0.0
    %320 = vmatpush1.msra.mxu0 0.0
    %321 = vmatprep.subr.mxu0 0.0
    %322 = vmatpush1.msra.mxu0 0.0
    %323 = vmatprep.subr.mxu0 0.0
    %324 = vmatpush1.msra.mxu0 0.0
    %325 = vmatprep.subr.mxu0 0.0
    %326 = vmatpush1.msra.mxu0 0.0
    %327 = vmatprep.subr.mxu0 0.0
    %328 = vmatpush1.msra.mxu0 0.0
    %329 = vmatprep.subr.mxu0 0.0
    %330 = vmatpush1.msra.mxu0 0.0
    %331 = vmatprep.subr.mxu0 0.0
    %332 = vmatpush1.msra.mxu0 0.0
    %333 = vmatprep.subr.mxu0 0.0
    %334 = vmatpush1.msra.mxu0 0.0
    %335 = vmatprep.subr.mxu0 0.0
    %336 = vmatpush1.msra.mxu0 0.0
    %337 = vmatprep.subr.mxu0 0.0
    %338 = vmatpush1.msra.mxu0 0.0
    %339 = vmatprep.subr.mxu0 0.0
    %340 = vmatpush1.msra.mxu0 0.0
    %341 = vmatprep.subr.mxu0 0.0
    %342 = vmatpush1.msra.mxu0 0.0
    %343 = vmatprep.subr.mxu0 0.0
    %344 = vmatpush1.msra.mxu0 0.0
    %345 = vmatprep.subr.mxu0 0.0
    %346 = vmatpush1.msra.mxu0 0.0
    %347 = vmatprep.subr.mxu0 0.0
    %348 = vmatpush1.msra.mxu0 0.0
    %349 = vmatprep.subr.mxu0 0.0
    %350 = vmatpush1.msra.mxu0 0.0
    %351 = vmatprep.mubr.f32.mxu0 0.0
    %352 = vmatmul.mubr.f32.gmra.mrb[0].mxu0 %v276
    %v353 = vpop.f32.mrb[0].mxu0
    %v354 = vadd.f32 0.0, %v353
    %v355 = vpop.f32.mrb[0].mxu0
    %356 = vmatprep.mubr.f32.mxu0 0.0
    %357 = vmatmul.mubr.f32.gmra.mrb[0].mxu0 %v279
    %v358 = vpop.f32.mrb[0].mxu0
    %v359 = vadd.f32 0.0, %v358
    %v360 = vpop.f32.mrb[0].mxu0
    %361 = vmatprep.mubr.f32.mxu0 0.0
    %362 = vmatmul.mubr.f32.gmra.mrb[0].mxu0 %v282
    %v363 = vpop.f32.mrb[0].mxu0
    %v364 = vadd.f32 0.0, %v363
    %v365 = vpop.f32.mrb[0].mxu0
    %366 = vmatprep.mubr.f32.mxu0 0.0
    %367 = vmatmul.mubr.f32.gmra.mrb[0].mxu0 %v285
    %v368 = vpop.f32.mrb[0].mxu0
    %v369 = vadd.f32 0.0, %v368
    %v370 = vpop.f32.mrb[0].mxu0
    %371 = vdwg.mxu0
    %376 = vrot.lane.b32.xlu0 %v75, 32
    %v377 = vpop.permute.xlu0 %376
    %378 = vrot.lane.b32.xlu0 %v76, 32
    %v379 = vpop.permute.xlu0 %378
    %380 = vrot.lane.b32.xlu0 %v77, 32
    %v381 = vpop.permute.xlu0 %380
    %382 = vrot.lane.b32.xlu0 %v78, 32
    %v383 = vpop.permute.xlu0 %382
    %vm388 = vcmask 261120
    %v389 = vsel %vm388, %v354, %v377
    %v390 = vsel %vm388, %v359, %v379
    %v391 = vsel %vm388, %v364, %v381
    %v392 = vsel %vm388, %v369, %v383
    %v393 = vld [vmem:[%s4] sm:$0xff]
    %v394 = vld [vmem:[%s4 + $0x8] sm:$0xff]
    %v395 = vld [vmem:[%s4 + $0x10] sm:$0xff]
    %v396 = vld [vmem:[%s4 + $0x18] sm:$0xff]
    %v397 = vld [vmem:[%s4 + $0x20] sm:$0xff]
    %v398 = vld [vmem:[%s4 + $0x28] sm:$0xff]
    %v399 = vld [vmem:[%s4 + $0x30] sm:$0xff]
    %v400 = vld [vmem:[%s4 + $0x38] sm:$0xff]
    %v401 = vld [vmem:[%s5] sm:$0x1]
    %v403 = vlaneseq
    %v404 = vshrl.u32 %v403, 7
    %v405 = vsub.s32 0, %v404
    %v406 = vrot.slane %v401, %v405
    %v409 = vsel %vm87, %v389, 0
    %v412 = vsel %vm87, %v390, 0
    %v415 = vsel %vm87, %v391, 0
    %v418 = vsel %vm87, %v392, 0
    %420 = vmatprep.subr.mxu0 0.0
    %421 = vmatpush1.msra.mxu0 %v393
    %422 = vmatprep.subr.mxu0 0.0
    %423 = vmatpush1.msra.mxu0 %v394
    %424 = vmatprep.subr.mxu0 0.0
    %425 = vmatpush1.msra.mxu0 %v395
    %426 = vmatprep.subr.mxu0 0.0
    %427 = vmatpush1.msra.mxu0 %v396
    %428 = vmatprep.subr.mxu0 0.0
    %429 = vmatpush1.msra.mxu0 %v397
    %430 = vmatprep.subr.mxu0 0.0
    %431 = vmatpush1.msra.mxu0 %v398
    %432 = vmatprep.subr.mxu0 0.0
    %433 = vmatpush1.msra.mxu0 %v399
    %434 = vmatprep.subr.mxu0 0.0
    %435 = vmatpush1.msra.mxu0 %v400
    %436 = vmatprep.subr.mxu0 0.0
    %437 = vmatpush1.msra.mxu0 0.0
    %438 = vmatprep.subr.mxu0 0.0
    %439 = vmatpush1.msra.mxu0 0.0
    %440 = vmatprep.subr.mxu0 0.0
    %441 = vmatpush1.msra.mxu0 0.0
    %442 = vmatprep.subr.mxu0 0.0
    %443 = vmatpush1.msra.mxu0 0.0
    %444 = vmatprep.subr.mxu0 0.0
    %445 = vmatpush1.msra.mxu0 0.0
    %446 = vmatprep.subr.mxu0 0.0
    %447 = vmatpush1.msra.mxu0 0.0
    %448 = vmatprep.subr.mxu0 0.0
    %449 = vmatpush1.msra.mxu0 0.0
    %450 = vmatprep.subr.mxu0 0.0
    %451 = vmatpush1.msra.mxu0 0.0
    %452 = vmatprep.subr.mxu0 0.0
    %453 = vmatpush1.msra.mxu0 0.0
    %454 = vmatprep.subr.mxu0 0.0
    %455 = vmatpush1.msra.mxu0 0.0
    %456 = vmatprep.subr.mxu0 0.0
    %457 = vmatpush1.msra.mxu0 0.0
    %458 = vmatprep.subr.mxu0 0.0
    %459 = vmatpush1.msra.mxu0 0.0
    %460 = vmatprep.subr.mxu0 0.0
    %461 = vmatpush1.msra.mxu0 0.0
    %462 = vmatprep.subr.mxu0 0.0
    %463 = vmatpush1.msra.mxu0 0.0
    %464 = vmatprep.subr.mxu0 0.0
    %465 = vmatpush1.msra.mxu0 0.0
    %466 = vmatprep.subr.mxu0 0.0
    %467 = vmatpush1.msra.mxu0 0.0
    %468 = vmatprep.subr.mxu0 0.0
    %469 = vmatpush1.msra.mxu0 0.0
    %470 = vmatprep.subr.mxu0 0.0
    %471 = vmatpush1.msra.mxu0 0.0
    %472 = vmatprep.subr.mxu0 0.0
    %473 = vmatpush1.msra.mxu0 0.0
    %474 = vmatprep.subr.mxu0 0.0
    %475 = vmatpush1.msra.mxu0 0.0
    %476 = vmatprep.subr.mxu0 0.0
    %477 = vmatpush1.msra.mxu0 0.0
    %478 = vmatprep.subr.mxu0 0.0
    %479 = vmatpush1.msra.mxu0 0.0
    %480 = vmatprep.subr.mxu0 0.0
    %481 = vmatpush1.msra.mxu0 0.0
    %482 = vmatprep.subr.mxu0 0.0
    %483 = vmatpush1.msra.mxu0 0.0
    %484 = vmatprep.mubr.f32.mxu0 0.0
    %485 = vmatmul.mubr.f32.gmra.mrb[0].mxu0 %v409
    %v486 = vpop.f32.mrb[0].mxu0
    %v487 = vadd.f32 %v406, %v486
    %v488 = vpop.f32.mrb[0].mxu0
    %489 = vmatprep.mubr.f32.mxu0 0.0
    %490 = vmatmul.mubr.f32.gmra.mrb[0].mxu0 %v412
    %v491 = vpop.f32.mrb[0].mxu0
    %v492 = vadd.f32 %v406, %v491
    %v493 = vpop.f32.mrb[0].mxu0
    %494 = vmatprep.mubr.f32.mxu0 0.0
    %495 = vmatmul.mubr.f32.gmra.mrb[0].mxu0 %v415
    %v496 = vpop.f32.mrb[0].mxu0
    %v497 = vadd.f32 %v406, %v496
    %v498 = vpop.f32.mrb[0].mxu0
    %499 = vmatprep.mubr.f32.mxu0 0.0
    %500 = vmatmul.mubr.f32.gmra.mrb[0].mxu0 %v418
    %v501 = vpop.f32.mrb[0].mxu0
    %v502 = vadd.f32 %v406, %v501
    %v503 = vpop.f32.mrb[0].mxu0
    %504 = vdwg.mxu0
    %v505 = vld [vmem:[#allocation5] sm:$0xff]
    %v506 = vld [vmem:[#allocation5 + $0x8] sm:$0xff]
    %v507 = vld [vmem:[#allocation5 + $0x10] sm:$0xff]
    %v508 = vld [vmem:[#allocation5 + $0x18] sm:$0xff]
    %v509 = vld [vmem:[%s7] sm:$0x1]
    %v511 = vlaneseq
    %v512 = vshrl.u32 %v511, 7
    %v513 = vsub.s32 0, %v512
    %v514 = vrot.slane %v509, %v513
    %v516 = vsel %vm388, %v75, 0
    %v518 = vsel %vm388, %v76, 0
    %v520 = vsel %vm388, %v77, 0
    %v522 = vsel %vm388, %v78, 0
    %524 = vmatprep.subr.mxu0 0.0
    %525 = vmatpush1.msra.mxu0 %v505
    %526 = vmatprep.subr.mxu0 0.0
    %527 = vmatpush1.msra.mxu0 %v506
    %528 = vmatprep.subr.mxu0 0.0
    %529 = vmatpush1.msra.mxu0 %v507
    %530 = vmatprep.subr.mxu0 0.0
    %531 = vmatpush1.msra.mxu0 %v508
    %532 = vmatprep.subr.mxu0 0.0
    %533 = vmatpush1.msra.mxu0 0.0
    %534 = vmatprep.subr.mxu0 0.0
    %535 = vmatpush1.msra.mxu0 0.0
    %536 = vmatprep.subr.mxu0 0.0
    %537 = vmatpush1.msra.mxu0 0.0
    %538 = vmatprep.subr.mxu0 0.0
    %539 = vmatpush1.msra.mxu0 0.0
    %540 = vmatprep.subr.mxu0 0.0
    %541 = vmatpush1.msra.mxu0 0.0
    %542 = vmatprep.subr.mxu0 0.0
    %543 = vmatpush1.msra.mxu0 0.0
    %544 = vmatprep.subr.mxu0 0.0
    %545 = vmatpush1.msra.mxu0 0.0
    %546 = vmatprep.subr.mxu0 0.0
    %547 = vmatpush1.msra.mxu0 0.0
    %548 = vmatprep.subr.mxu0 0.0
    %549 = vmatpush1.msra.mxu0 0.0
    %550 = vmatprep.subr.mxu0 0.0
    %551 = vmatpush1.msra.mxu0 0.0
    %552 = vmatprep.subr.mxu0 0.0
    %553 = vmatpush1.msra.mxu0 0.0
    %554 = vmatprep.subr.mxu0 0.0
    %555 = vmatpush1.msra.mxu0 0.0
    %556 = vmatprep.subr.mxu0 0.0
    %557 = vmatpush1.msra.mxu0 0.0
    %558 = vmatprep.subr.mxu0 0.0
    %559 = vmatpush1.msra.mxu0 0.0
    %560 = vmatprep.subr.mxu0 0.0
    %561 = vmatpush1.msra.mxu0 0.0
    %562 = vmatprep.subr.mxu0 0.0
    %563 = vmatpush1.msra.mxu0 0.0
    %564 = vmatprep.subr.mxu0 0.0
    %565 = vmatpush1.msra.mxu0 0.0
    %566 = vmatprep.subr.mxu0 0.0
    %567 = vmatpush1.msra.mxu0 0.0
    %568 = vmatprep.subr.mxu0 0.0
    %569 = vmatpush1.msra.mxu0 0.0
    %570 = vmatprep.subr.mxu0 0.0
    %571 = vmatpush1.msra.mxu0 0.0
    %572 = vmatprep.subr.mxu0 0.0
    %573 = vmatpush1.msra.mxu0 0.0
    %574 = vmatprep.subr.mxu0 0.0
    %575 = vmatpush1.msra.mxu0 0.0
    %576 = vmatprep.subr.mxu0 0.0
    %577 = vmatpush1.msra.mxu0 0.0
    %578 = vmatprep.subr.mxu0 0.0
    %579 = vmatpush1.msra.mxu0 0.0
    %580 = vmatprep.subr.mxu0 0.0
    %581 = vmatpush1.msra.mxu0 0.0
    %582 = vmatprep.subr.mxu0 0.0
    %583 = vmatpush1.msra.mxu0 0.0
    %584 = vmatprep.subr.mxu0 0.0
    %585 = vmatpush1.msra.mxu0 0.0
    %586 = vmatprep.subr.mxu0 0.0
    %587 = vmatpush1.msra.mxu0 0.0
    %588 = vmatprep.mubr.f32.mxu0 0.0
    %589 = vmatmul.mubr.f32.gmra.mrb[0].mxu0 %v516
    %v590 = vpop.f32.mrb[0].mxu0
    %v591 = vadd.f32 %v514, %v590
    %v592 = vpop.f32.mrb[0].mxu0
    %593 = vmatprep.mubr.f32.mxu0 0.0
    %594 = vmatmul.mubr.f32.gmra.mrb[0].mxu0 %v518
    %v595 = vpop.f32.mrb[0].mxu0
    %v596 = vadd.f32 %v514, %v595
    %v597 = vpop.f32.mrb[0].mxu0
    %598 = vmatprep.mubr.f32.mxu0 0.0
    %599 = vmatmul.mubr.f32.gmra.mrb[0].mxu0 %v520
    %v600 = vpop.f32.mrb[0].mxu0
    %v601 = vadd.f32 %v514, %v600
    %v602 = vpop.f32.mrb[0].mxu0
    %603 = vmatprep.mubr.f32.mxu0 0.0
    %604 = vmatmul.mubr.f32.gmra.mrb[0].mxu0 %v522
    %v605 = vpop.f32.mrb[0].mxu0
    %v606 = vadd.f32 %v514, %v605
    %v607 = vpop.f32.mrb[0].mxu0
    %608 = vdwg.mxu0
    %v609 = vxor.u32 %v487, 2147483648
    %v610 = vxor.u32 %v492, 2147483648
    %v611 = vxor.u32 %v497, 2147483648
    %v612 = vxor.u32 %v502, 2147483648
    %v613 = vmul.f32 %v609, 1.442695
    %v614 = vpow.pop %v613
    %v615 = vmul.f32 %v610, 1.442695
    %v616 = vpow.pop %v615
    %v617 = vmul.f32 %v611, 1.442695
    %v618 = vpow.pop %v617
    %v619 = vmul.f32 %v612, 1.442695
    %v620 = vpow.pop %v619
    %v621 = vadd.f32 %v614, 1.0
    %v622 = vadd.f32 %v616, 1.0
    %v623 = vadd.f32 %v618, 1.0
    %v624 = vadd.f32 %v620, 1.0
    %v625 = vrcp.pop %v621
    %v626 = vmul.f32 1.0, %v625
    %v627 = vrcp.pop %v622
    %v628 = vmul.f32 1.0, %v627
    %v629 = vrcp.pop %v623
    %v630 = vmul.f32 1.0, %v629
    %v631 = vrcp.pop %v624
    %v632 = vmul.f32 1.0, %v631
    %v633 = vsub.f32 %v626, 1.0
    %v634 = vsub.f32 %v628, 1.0
    %v635 = vsub.f32 %v630, 1.0
    %v636 = vsub.f32 %v632, 1.0
    %v637 = vmul.f32 %v633, %v591
    %v638 = vmul.f32 %v634, %v596
    %v639 = vmul.f32 %v635, %v601
    %v640 = vmul.f32 %v636, %v606
    %645 = vrot.lane.b32.xlu0 %v637, 64
    %v646 = vpop.permute.xlu0 %645
    %647 = vrot.lane.b32.xlu0 %v638, 64
    %v648 = vpop.permute.xlu0 %647
    %649 = vrot.lane.b32.xlu0 %v639, 64
    %v650 = vpop.permute.xlu0 %649
    %651 = vrot.lane.b32.xlu0 %v640, 64
    %v652 = vpop.permute.xlu0 %651
    %v657 = vadd.f32 %v487, %v646
    %v658 = vadd.f32 %v492, %v648
    %v659 = vadd.f32 %v497, %v650
    %v660 = vadd.f32 %v502, %v652
    %v661 = vtanh.pop %v657
    %v662 = vtanh.pop %v658
    %v663 = vtanh.pop %v659
    %v664 = vtanh.pop %v660
    %v665 = vsub.f32 1.0, %v626
    %v666 = vsub.f32 1.0, %v628
    %v667 = vsub.f32 1.0, %v630
    %v668 = vsub.f32 1.0, %v632
    %673 = vrot.lane.b32.xlu0 %v661, 96
    %v674 = vpop.permute.xlu0 %673
    %675 = vrot.lane.b32.xlu0 %v662, 96
    %v676 = vpop.permute.xlu0 %675
    %677 = vrot.lane.b32.xlu0 %v663, 96
    %v678 = vpop.permute.xlu0 %677
    %679 = vrot.lane.b32.xlu0 %v664, 96
    %v680 = vpop.permute.xlu0 %679
    %v685 = vmul.f32 %v665, %v674
    %v686 = vmul.f32 %v666, %v676
    %v687 = vmul.f32 %v667, %v678
    %v688 = vmul.f32 %v668, %v680
    %v689 = vmul.f32 %v626, %v377
    %v690 = vmul.f32 %v628, %v379
    %v691 = vmul.f32 %v630, %v381
    %v692 = vmul.f32 %v632, %v383
    %v693 = vadd.f32 %v685, %v689
    %v694 = vadd.f32 %v686, %v690
    %v695 = vadd.f32 %v687, %v691
    %v696 = vadd.f32 %v688, %v692
    %701 = vrot.lane.b32.xlu0 %v693, 96
    %v702 = vpop.permute.xlu0 %701
    %703 = vrot.lane.b32.xlu0 %v694, 96
    %v704 = vpop.permute.xlu0 %703
    %705 = vrot.lane.b32.xlu0 %v695, 96
    %v706 = vpop.permute.xlu0 %705
    %707 = vrot.lane.b32.xlu0 %v696, 96
    %v708 = vpop.permute.xlu0 %707
    %v714 = vsel %vm388, %v179, 0
    %v717 = vsel %vm388, %v184, 0
    %v720 = vsel %vm388, %v189, 0
    %v723 = vsel %vm388, %v194, 0
    %v726 = vsel %vm388, %v199, 0
    %v729 = vsel %vm388, %v204, 0
    %v732 = vsel %vm388, %v209, 0
    %v735 = vsel %vm388, %v214, 0
    %737 = vmatprep.subr.mxu0 0.0
    %738 = vmatpush1.msra.mxu0 %v702
    %739 = vmatprep.subr.mxu0 0.0
    %740 = vmatpush1.msra.mxu0 %v704
    %741 = vmatprep.subr.mxu0 0.0
    %742 = vmatpush1.msra.mxu0 %v706
    %743 = vmatprep.subr.mxu0 0.0
    %744 = vmatpush1.msra.mxu0 %v708
    %745 = vmatprep.subr.mxu0 0.0
    %746 = vmatpush1.msra.mxu0 0.0
    %747 = vmatprep.subr.mxu0 0.0
    %748 = vmatpush1.msra.mxu0 0.0
    %749 = vmatprep.subr.mxu0 0.0
    %750 = vmatpush1.msra.mxu0 0.0
    %751 = vmatprep.subr.mxu0 0.0
    %752 = vmatpush1.msra.mxu0 0.0
    %753 = vmatprep.subr.mxu0 0.0
    %754 = vmatpush1.msra.mxu0 0.0
    %755 = vmatprep.subr.mxu0 0.0
    %756 = vmatpush1.msra.mxu0 0.0
    %757 = vmatprep.subr.mxu0 0.0
    %758 = vmatpush1.msra.mxu0 0.0
    %759 = vmatprep.subr.mxu0 0.0
    %760 = vmatpush1.msra.mxu0 0.0
    %761 = vmatprep.subr.mxu0 0.0
    %762 = vmatpush1.msra.mxu0 0.0
    %763 = vmatprep.subr.mxu0 0.0
    %764 = vmatpush1.msra.mxu0 0.0
    %765 = vmatprep.subr.mxu0 0.0
    %766 = vmatpush1.msra.mxu0 0.0
    %767 = vmatprep.subr.mxu0 0.0
    %768 = vmatpush1.msra.mxu0 0.0
    %769 = vmatprep.subr.mxu0 0.0
    %770 = vmatpush1.msra.mxu0 0.0
    %771 = vmatprep.subr.mxu0 0.0
    %772 = vmatpush1.msra.mxu0 0.0
    %773 = vmatprep.subr.mxu0 0.0
    %774 = vmatpush1.msra.mxu0 0.0
    %775 = vmatprep.subr.mxu0 0.0
    %776 = vmatpush1.msra.mxu0 0.0
    %777 = vmatprep.subr.mxu0 0.0
    %778 = vmatpush1.msra.mxu0 0.0
    %779 = vmatprep.subr.mxu0 0.0
    %780 = vmatpush1.msra.mxu0 0.0
    %781 = vmatprep.subr.mxu0 0.0
    %782 = vmatpush1.msra.mxu0 0.0
    %783 = vmatprep.subr.mxu0 0.0
    %784 = vmatpush1.msra.mxu0 0.0
    %785 = vmatprep.subr.mxu0 0.0
    %786 = vmatpush1.msra.mxu0 0.0
    %787 = vmatprep.subr.mxu0 0.0
    %788 = vmatpush1.msra.mxu0 0.0
    %789 = vmatprep.subr.mxu0 0.0
    %790 = vmatpush1.msra.mxu0 0.0
    %791 = vmatprep.subr.mxu0 0.0
    %792 = vmatpush1.msra.mxu0 0.0
    %793 = vmatprep.subr.mxu0 0.0
    %794 = vmatpush1.msra.mxu0 0.0
    %795 = vmatprep.subr.mxu0 0.0
    %796 = vmatpush1.msra.mxu0 0.0
    %797 = vmatprep.subr.mxu0 0.0
    %798 = vmatpush1.msra.mxu0 0.0
    %799 = vmatprep.subr.mxu0 0.0
    %800 = vmatpush1.msra.mxu0 0.0
    %801 = vmatprep.mubr.f32.mxu0 0.0
    %802 = vmatmul.mubr.f32.gmra.mrb[0].mxu0 %v714
    %v803 = vpop.f32.mrb[0].mxu0
    %v804 = vadd.f32 0.0, %v803
    %v805 = vpop.f32.mrb[0].mxu0
    %806 = vmatprep.mubr.f32.mxu0 0.0
    %807 = vmatmul.mubr.f32.gmra.mrb[0].mxu0 %v717
    %v808 = vpop.f32.mrb[0].mxu0
    %v809 = vadd.f32 0.0, %v808
    %v810 = vpop.f32.mrb[0].mxu0
    %811 = vmatprep.mubr.f32.mxu0 0.0
    %812 = vmatmul.mubr.f32.gmra.mrb[0].mxu0 %v720
    %v813 = vpop.f32.mrb[0].mxu0
    %v814 = vadd.f32 0.0, %v813
    %v815 = vpop.f32.mrb[0].mxu0
    %816 = vmatprep.mubr.f32.mxu0 0.0
    %817 = vmatmul.mubr.f32.gmra.mrb[0].mxu0 %v723
    %v818 = vpop.f32.mrb[0].mxu0
    %v819 = vadd.f32 0.0, %v818
    %v820 = vpop.f32.mrb[0].mxu0
    %821 = vmatprep.mubr.f32.mxu0 0.0
    %822 = vmatmul.mubr.f32.gmra.mrb[0].mxu0 %v726
    %v823 = vpop.f32.mrb[0].mxu0
    %v824 = vadd.f32 0.0, %v823
    %v825 = vpop.f32.mrb[0].mxu0
    %826 = vmatprep.mubr.f32.mxu0 0.0
    %827 = vmatmul.mubr.f32.gmra.mrb[0].mxu0 %v729
    %v828 = vpop.f32.mrb[0].mxu0
    %v829 = vadd.f32 0.0, %v828
    %v830 = vpop.f32.mrb[0].mxu0
    %831 = vmatprep.mubr.f32.mxu0 0.0
    %832 = vmatmul.mubr.f32.gmra.mrb[0].mxu0 %v732
    %v833 = vpop.f32.mrb[0].mxu0
    %v834 = vadd.f32 0.0, %v833
    %v835 = vpop.f32.mrb[0].mxu0
    %836 = vmatprep.mubr.f32.mxu0 0.0
    %837 = vmatmul.mubr.f32.gmra.mrb[0].mxu0 %v735
    %v838 = vpop.f32.mrb[0].mxu0
    %v839 = vadd.f32 0.0, %v838
    %v840 = vpop.f32.mrb[0].mxu0
    %841 = vdwg.mxu0
    %v842 = vmax.f32 %v804, 0.0
    %v843 = vmax.f32 %v809, 0.0
    %v844 = vmax.f32 %v814, 0.0
    %v845 = vmax.f32 %v819, 0.0
    %v846 = vmax.f32 %v824, 0.0
    %v847 = vmax.f32 %v829, 0.0
    %v848 = vmax.f32 %v834, 0.0
    %v849 = vmax.f32 %v839, 0.0
    %v850 = vld [vmem:[%s9] sm:$0x1]
    %v852 = vlaneseq
    %v853 = vshrl.u32 %v852, 7
    %v854 = vsub.s32 0, %v853
    %v855 = vrot.slane %v850, %v854
    %v857 = vmul.f32 %v842, %v855
    %v858 = vmul.f32 %v843, %v855
    %v859 = vmul.f32 %v844, %v855
    %v860 = vmul.f32 %v845, %v855
    %v861 = vmul.f32 %v846, %v855
    %v862 = vmul.f32 %v847, %v855
    %v863 = vmul.f32 %v848, %v855
    %v864 = vmul.f32 %v849, %v855
    %v865 = vsel %vm388, %v857, 0.0
    %866 = vadd.xlane.f32.xlu0 %v865
    %v867 = vpop.xlane.xlu0 %866
    %v868 = vsel %vm388, %v858, 0.0
    %869 = vadd.xlane.f32.xlu0 %v868
    %v870 = vpop.xlane.xlu0 %869
    %v871 = vsel %vm388, %v859, 0.0
    %872 = vadd.xlane.f32.xlu0 %v871
    %v873 = vpop.xlane.xlu0 %872
    %v874 = vsel %vm388, %v860, 0.0
    %875 = vadd.xlane.f32.xlu0 %v874
    %v876 = vpop.xlane.xlu0 %875
    %v877 = vsel %vm388, %v861, 0.0
    %878 = vadd.xlane.f32.xlu0 %v877
    %v879 = vpop.xlane.xlu0 %878
    %v880 = vsel %vm388, %v862, 0.0
    %881 = vadd.xlane.f32.xlu0 %v880
    %v882 = vpop.xlane.xlu0 %881
    %v883 = vsel %vm388, %v863, 0.0
    %884 = vadd.xlane.f32.xlu0 %v883
    %v885 = vpop.xlane.xlu0 %884
    %v886 = vsel %vm388, %v864, 0.0
    %887 = vadd.xlane.f32.xlu0 %v886
    %v888 = vpop.xlane.xlu0 %887
    %s889 = sld [smem:[#allocation2]]
    %v890 = vstv %s889
    %v891 = vadd.f32 %v867, %v890
    %v892 = vadd.f32 %v870, %v890
    %v893 = vadd.f32 %v873, %v890
    %v894 = vadd.f32 %v876, %v890
    %v895 = vadd.f32 %v879, %v890
    %v896 = vadd.f32 %v882, %v890
    %v897 = vadd.f32 %v885, %v890
    %v898 = vadd.f32 %v888, %v890
    %vm899 = vcmask 7168
    %900 = vst.msk [vmem:[%s11] sm:$0xff] %vm899, %v891
    %901 = vst.msk [vmem:[%s11 + $0x8] sm:$0xff] %vm899, %v892
    %902 = vst.msk [vmem:[%s11 + $0x10] sm:$0xff] %vm899, %v893
    %903 = vst.msk [vmem:[%s11 + $0x18] sm:$0xff] %vm899, %v894
    %904 = vst.msk [vmem:[%s11 + $0x20] sm:$0xff] %vm899, %v895
    %905 = vst.msk [vmem:[%s11 + $0x28] sm:$0xff] %vm899, %v896
    %906 = vst.msk [vmem:[%s11 + $0x30] sm:$0xff] %vm899, %v897
    %907 = vst.msk [vmem:[%s11 + $0x38] sm:$0xff] %vm899, %v898
    // Predicated region
    $region54: #{tpu_custom_call.1} parent=1 // pred_check
      _
    $region55: #{tpu_custom_call.1} parent=1 // pred_check_branch
      %909 = sbr.rel (0) target = $region57
    $region56: #{tpu_custom_call.1} parent=1 // pred_region
      _
    $region57: #{tpu_custom_call.1} parent=1 // pred_fallthru
      _
    // Predicated region
    $region58: #{tpu_custom_call.1} parent=1 // pred_check
      _
    $region59: #{tpu_custom_call.1} parent=1 // pred_check_branch
      %911 = sbr.rel (0) target = $region61
    $region60: #{tpu_custom_call.1} parent=1 // pred_region
      _
    $region61: #{tpu_custom_call.1} parent=1 // pred_fallthru
      _
    %912 = vsyncpa [#allocation4], 1
    %913 = vsyncpa [#allocation6], 1

</llo_original>
